<compile_context>
chip_gen: v7x
topology: tpu7x:2x2x1
jax: 0.10.0
libtpu: 0.0.40
codegen_flags: <defaults>
</compile_context>

<pallas_src>
import functools

import jax
import jax.numpy as jnp
from jax import lax
from jax.experimental import pallas as pl
from jax.experimental.pallas import tpu as pltpu

EPS = 0.1
IGNORE_INDEX = -100


def _round_up(x, m):
    return ((x + m - 1) // m) * m


def _vmem_capacity_bytes():
    try:
        info = pltpu.get_tpu_info()
        cap = getattr(info, "vmem_capacity_bytes", None)
        if cap:
            return int(cap)
    except Exception:
        pass
    return 64 * 1024 * 1024  # conservative: v7x per-TensorCore VMEM


def _ls_ce_kernel(x_ref, t_ref, smooth_ref, nll_ref, *,
                  n_rows, ignore_index, steps_per_shard, needs_row_mask):
    # x_ref: (TM, C) logits in native dtype, t_ref: (TM, 1) int32 targets.
    # smooth_ref / nll_ref: (1, 8, 128) f32 per-shard accumulators (every
    # element of the tile holds the same running sum; wrapper reads [s,0,0]).
    s = pl.program_id(0)   # row-shard axis ("parallel" -> megacore on v7x)
    i = pl.program_id(1)   # tile axis within shard ("arbitrary", accumulates)

    @pl.when(i == 0)
    def _init():
        smooth_ref[...] = jnp.zeros_like(smooth_ref)
        nll_ref[...] = jnp.zeros_like(nll_ref)

    x = x_ref[...]                                   # (TM, C) native dtype
    t = t_ref[...]                                   # (TM, 1) int32
    tm, c = x.shape

    # Numerically stable per-row log-sum-exp in f32 (logp never materialized).
    xf = x.astype(jnp.float32)
    m = jnp.max(xf, axis=-1, keepdims=True)                              # (TM,1)
    lse = m + jnp.log(jnp.sum(jnp.exp(xf - m), axis=-1, keepdims=True))  # (TM,1)

    # Smoothing term per row: -sum_c log_softmax(x) = C*lse - sum_c x
    rowsum_x = jnp.sum(xf, axis=-1, keepdims=True)                       # (TM,1)
    neg_rowsum_logp = jnp.float32(c) * lse - rowsum_x                    # (TM,1)

    # Gather x[row, target[row]]: (1,C) lane iota broadcast-compared against
    # the (TM,1) targets; the select stays in the native dtype (exact, since
    # all unselected entries are zeros) and only the picked row is upcast.
    col = lax.broadcasted_iota(jnp.int32, (1, c), 1)
    onehot = col == t                                                    # (TM,C)
    zero = jnp.zeros((), dtype=x.dtype)
    picked_x = jnp.sum(jnp.where(onehot, x, zero), axis=-1,
                       keepdims=True).astype(jnp.float32)                # (TM,1)

    valid = t != ignore_index                                            # (TM,1)
    if needs_row_mask:
        # Ragged / dead tiles: rows whose global index >= N are garbage reads.
        # Mask them per-row with where() (NOT multiply -> no NaN propagation).
        tile = s * steps_per_shard + i          # unclamped tile index
        row_idx = tile * tm + lax.broadcasted_iota(jnp.int32, (tm, 1), 0)
        in_range = row_idx < n_rows
        neg_rowsum_logp = jnp.where(in_range, neg_rowsum_logp, 0.0)
        valid = jnp.logical_and(valid, in_range)

    nll_rows = jnp.where(valid, lse - picked_x, 0.0)                     # (TM,1)

    # Scalar partial sums broadcast-accumulated into the resident output tile.
    smooth_ref[...] += jnp.sum(neg_rowsum_logp)
    nll_ref[...] += jnp.sum(nll_rows)


def label_smoothing_cross_entropy(logits, targets, *, eps=EPS,
                                  ignore_index=IGNORE_INDEX,
                                  block_rows=None, num_shards=2):
    """logits: (N, C) float (f32/bf16), targets: (N,) int. Scalar f32 loss."""
    n, c = logits.shape
    t2d = targets.astype(jnp.int32).reshape(n, 1)
    dtype_bytes = jnp.dtype(logits.dtype).itemsize

    vmem_cap = _vmem_capacity_bytes()
    # Scoped VMEM limit: generous on 128 MiB parts (v5e/v6e), capped for v7x.
    vmem_limit = min((vmem_cap * 3) // 4, 100 * 1024 * 1024)

    if block_rows is None:
        # True footprint per step ~= 2x native logits DMA buffers plus ~4
        # materialized (TM,C) f32 temporaries (astype, exp operand, select,...)
        budget = max(8 * 1024 * 1024, vmem_limit - 4 * 1024 * 1024)
        per_row_bytes = c * (2 * dtype_bytes + 16)
        tm = max(8, min(4096, budget // per_row_bytes))
        tm = (tm // 8) * 8
    else:
        tm = max(8, (block_rows // 8) * 8)
    tm = min(tm, _round_up(n, 8))

    total_tiles = pl.cdiv(n, tm)
    ns = max(1, min(int(num_shards), total_tiles))    # row shards (v7x: 2 TCs)
    st = pl.cdiv(total_tiles, ns)                     # tiles per shard
    needs_row_mask = (ns * st * tm) != n

    def row_block(s, i):
        # Clamp so dead tiles (when ns*st > total_tiles) re-read the last real
        # tile; their rows are fully masked in-kernel via the unclamped index.
        return (jnp.minimum(s * st + i, total_tiles - 1), 0)

    def out_block(s, i):
        return (s, 0, 0)

    kernel = functools.partial(
        _ls_ce_kernel, n_rows=n, ignore_index=int(ignore_index),
        steps_per_shard=st, needs_row_mask=needs_row_mask)

    cost = pl.CostEstimate(
        flops=6 * n * c,
        transcendentals=n * c,                       # exp in logsumexp
        bytes_accessed=n * c * dtype_bytes + n * 4 + ns * 2 * 8 * 128 * 4)

    smooth_p, nll_p = pl.pallas_call(
        kernel,
        out_shape=(jax.ShapeDtypeStruct((ns, 8, 128), jnp.float32),
                   jax.ShapeDtypeStruct((ns, 8, 128), jnp.float32)),
        grid_spec=pltpu.PrefetchScalarGridSpec(
            num_scalar_prefetch=0,
            grid=(ns, st),
            in_specs=[
                pl.BlockSpec((tm, c), row_block),     # logits tile
                pl.BlockSpec((tm, 1), row_block),     # targets tile
            ],
            out_specs=(
                pl.BlockSpec((1, 8, 128), out_block),  # per-shard smooth sum
                pl.BlockSpec((1, 8, 128), out_block),  # per-shard nll sum
            ),
        ),
        compiler_params=pltpu.CompilerParams(
            dimension_semantics=("parallel", "arbitrary"),
            vmem_limit_bytes=int(vmem_limit),
        ),
        cost_estimate=cost,
    )(logits, t2d)

    # Combine per-shard partials; valid-row count is a trivial wrapper reduce.
    smooth_sum = jnp.sum(smooth_p[:, 0, 0])
    nll_sum = jnp.sum(nll_p[:, 0, 0])
    valid_cnt = jnp.sum((targets != ignore_index).astype(jnp.float32))

    # Matches the PyTorch module: the smoothing term averages over ALL rows
    # (including ignore_index rows); nll averages over valid rows only
    # (0/0 -> NaN when every row is ignored, same as func.nll_loss).
    smooth = smooth_sum / jnp.float32(n)
    nll = nll_sum / valid_cnt
    return smooth * (eps / c) + (1.0 - eps) * nll


def _reference(logits, targets):
    # Pure-JAX mirror of the PyTorch forward (reduction='mean').
    logits = logits.astype(jnp.float32)
    c = logits.shape[-1]
    logp = jax.nn.log_softmax(logits, axis=-1)
    smooth = jnp.mean(-jnp.sum(logp, axis=-1))          # mean over ALL rows
    valid = targets != IGNORE_INDEX
    safe_t = jnp.where(valid, targets, 0)
    picked = jnp.take_along_axis(logp, safe_t[:, None], axis=-1)[:, 0]
    nll = -jnp.sum(picked * valid) / jnp.sum(valid)     # mean over valid rows
    return smooth * EPS / c + (1.0 - EPS) * nll


if __name__ == "__main__":
    key = jax.random.PRNGKey(0)
    k1, k2 = jax.random.split(key)
    # N deliberately not a multiple of the forced tile size to exercise the
    # ragged-tile masking path, multi-step accumulation and the shard axis.
    N, C = 12, 32
    logits = jax.random.normal(k1, (N, C), dtype=jnp.float32)
    targets = jax.random.randint(k2, (N,), 0, C, dtype=jnp.int32)
    targets = targets.at[3].set(IGNORE_INDEX)  # exercise ignore_index path

    ref = jax.block_until_ready(_reference(logits, targets))

    # 1) default tile size (single tile, single shard)
    loss_default = jax.block_until_ready(
        label_smoothing_cross_entropy(logits, targets))
    assert jnp.allclose(loss_default, ref, rtol=1e-5, atol=1e-6), (loss_default, ref)

    # 2) forced small tile, one shard -> multi-step accumulation + ragged tile
    loss_tiled = jax.block_until_ready(
        label_smoothing_cross_entropy(logits, targets, block_rows=8, num_shards=1))
    assert jnp.allclose(loss_tiled, ref, rtol=1e-5, atol=1e-6), (loss_tiled, ref)

    # 3) two row shards -> exercises the "parallel" shard axis + partial sums
    loss_shard = jax.block_until_ready(
        label_smoothing_cross_entropy(logits, targets, block_rows=8, num_shards=2))
    assert jnp.allclose(loss_shard, ref, rtol=1e-5, atol=1e-6), (loss_shard, ref)

    # 4) bf16 logits travel through the DMA in bf16; gather runs on the native
    #    tile and only the per-row results are upcast in-kernel.
    logits_bf16 = logits.astype(jnp.bfloat16)
    ref_bf16 = jax.block_until_ready(_reference(logits_bf16, targets))
    loss_bf16 = jax.block_until_ready(
        label_smoothing_cross_entropy(logits_bf16, targets, block_rows=8))
    assert jnp.allclose(loss_bf16, ref_bf16, rtol=1e-3, atol=1e-4), (loss_bf16, ref_bf16)

    print("KERNEL_OK")
</pallas_src>

<mosaic_0001>
module attributes {stable_mosaic.version = 11 : i64} {
  func.func @_ls_ce_kernel(%arg0: i32, %arg1: i32, %arg2: memref<16x32xf32, #tpu.memory_space<vmem>>, %arg3: memref<16x1xi32, #tpu.memory_space<vmem>>, %arg4: memref<1x8x128xf32, #tpu.memory_space<vmem>>, %arg5: memref<1x8x128xf32, #tpu.memory_space<vmem>>) attributes {dimension_semantics = [#tpu.dimension_semantics<parallel>, #tpu.dimension_semantics<arbitrary>], iteration_bounds = array<i64: 1, 1>, scalar_prefetch = 0 : i64, scratch_operands = 0 : i64, tpu.core_type = #tpu.core_type<tc>, window_params = [{transform_indices = @transform_0, window_bounds = array<i64: 16, 32>}, {transform_indices = @transform_1, window_bounds = array<i64: 16, 1>}, {transform_indices = @transform_2, window_bounds = array<i64: 1, 8, 128>}, {transform_indices = @transform_3, window_bounds = array<i64: 1, 8, 128>}]} {
    %c0_i32 = arith.constant 0 : i32
    %0 = arith.cmpi eq, %arg1, %c0_i32 : i32
    %1 = arith.extui %0 : i1 to i32
    %c0_i32_0 = arith.constant 0 : i32
    %2 = arith.cmpi ne, %1, %c0_i32_0 : i32
    scf.if %2 {
      %cst_25 = arith.constant 0.000000e+00 : f32
      %59 = vector.broadcast %cst_25 : f32 to vector<1x8x128xf32>
      %c0_26 = arith.constant 0 : index
      %c0_27 = arith.constant 0 : index
      %c0_28 = arith.constant 0 : index
      %60 = vector.load %arg4[%c0_26, %c0_27, %c0_28] : memref<1x8x128xf32, #tpu.memory_space<vmem>>, vector<1x8x128xf32>
      tpu.vector_store %arg4[%c0_26, %c0_27, %c0_28], %59 {strides = array<i32>} : memref<1x8x128xf32, #tpu.memory_space<vmem>>, vector<1x8x128xf32>,
      %cst_29 = arith.constant 0.000000e+00 : f32
      %61 = vector.broadcast %cst_29 : f32 to vector<1x8x128xf32>
      %c0_30 = arith.constant 0 : index
      %c0_31 = arith.constant 0 : index
      %c0_32 = arith.constant 0 : index
      %62 = vector.load %arg5[%c0_30, %c0_31, %c0_32] : memref<1x8x128xf32, #tpu.memory_space<vmem>>, vector<1x8x128xf32>
      tpu.vector_store %arg5[%c0_30, %c0_31, %c0_32], %61 {strides = array<i32>} : memref<1x8x128xf32, #tpu.memory_space<vmem>>, vector<1x8x128xf32>,
    } else {
    }
    %c0 = arith.constant 0 : index
    %c0_1 = arith.constant 0 : index
    %3 = vector.load %arg2[%c0, %c0_1] : memref<16x32xf32, #tpu.memory_space<vmem>>, vector<16x32xf32>
    %c0_2 = arith.constant 0 : index
    %c0_3 = arith.constant 0 : index
    %4 = vector.load %arg3[%c0_2, %c0_3] : memref<16x1xi32, #tpu.memory_space<vmem>>, vector<16x1xi32>
    %cst = arith.constant dense<0xFF800000> : vector<16xf32>
    %5 = vector.multi_reduction <maximumf>, %3, %cst [1] : vector<16x32xf32> to vector<16xf32>
    %6 = vector.shape_cast %5 : vector<16xf32> to vector<16x1xf32>
    %7 = vector.broadcast %6 : vector<16x1xf32> to vector<16x32xf32>
    %8 = arith.subf %3, %7 : vector<16x32xf32>
    %9 = math.exp %8 : vector<16x32xf32>
    %cst_4 = arith.constant dense<0.000000e+00> : vector<16xf32>
    %10 = vector.multi_reduction <add>, %9, %cst_4 [1] : vector<16x32xf32> to vector<16xf32>
    %11 = vector.shape_cast %10 : vector<16xf32> to vector<16x1xf32>
    %12 = math.log %11 : vector<16x1xf32>
    %13 = arith.addf %6, %12 : vector<16x1xf32>
    %cst_5 = arith.constant dense<0.000000e+00> : vector<16xf32>
    %14 = vector.multi_reduction <add>, %3, %cst_5 [1] : vector<16x32xf32> to vector<16xf32>
    %15 = vector.shape_cast %14 : vector<16xf32> to vector<16x1xf32>
    %cst_6 = arith.constant 3.200000e+01 : f32
    %16 = vector.broadcast %cst_6 : f32 to vector<16x1xf32>
    %17 = arith.mulf %16, %13 : vector<16x1xf32>
    %18 = arith.subf %17, %15 : vector<16x1xf32>
    %19 = tpu.iota {dimensions = array<i32: 1>} : vector<1x32xi32>
    %20 = vector.broadcast %19 : vector<1x32xi32> to vector<16x32xi32>
    %21 = vector.broadcast %4 : vector<16x1xi32> to vector<16x32xi32>
    %22 = arith.cmpi eq, %20, %21 : vector<16x32xi32>
    %cst_7 = arith.constant 0.000000e+00 : f32
    %23 = vector.broadcast %cst_7 : f32 to vector<16x32xf32>
    %24 = arith.select %22, %3, %23 : vector<16x32xi1>, vector<16x32xf32>
    %cst_8 = arith.constant dense<0.000000e+00> : vector<16xf32>
    %25 = vector.multi_reduction <add>, %24, %cst_8 [1] : vector<16x32xf32> to vector<16xf32>
    %26 = vector.shape_cast %25 : vector<16xf32> to vector<16x1xf32>
    %c-100_i32 = arith.constant -100 : i32
    %27 = vector.broadcast %c-100_i32 : i32 to vector<16x1xi32>
    %28 = arith.cmpi ne, %4, %27 : vector<16x1xi32>
    %c1_i32 = arith.constant 1 : i32
    %29 = arith.muli %arg0, %c1_i32 : i32
    %30 = arith.addi %29, %arg1 : i32
    %c16_i32 = arith.constant 16 : i32
    %31 = arith.muli %30, %c16_i32 : i32
    %32 = tpu.iota {dimensions = array<i32: 0>} : vector<16x1xi32>
    %33 = vector.broadcast %31 : i32 to vector<16x1xi32>
    %34 = arith.addi %33, %32 : vector<16x1xi32>
    %c12_i32 = arith.constant 12 : i32
    %35 = vector.broadcast %c12_i32 : i32 to vector<16x1xi32>
    %36 = arith.cmpi slt, %34, %35 : vector<16x1xi32>
    %cst_9 = arith.constant 0.000000e+00 : f32
    %37 = vector.broadcast %cst_9 : f32 to vector<16x1xf32>
    %38 = arith.select %36, %18, %37 : vector<16x1xi1>, vector<16x1xf32>
    %39 = arith.andi %28, %36 : vector<16x1xi1>
    %40 = arith.subf %13, %26 : vector<16x1xf32>
    %cst_10 = arith.constant 0.000000e+00 : f32
    %41 = vector.broadcast %cst_10 : f32 to vector<16x1xf32>
    %42 = arith.select %39, %40, %41 : vector<16x1xi1>, vector<16x1xf32>
    %c0_11 = arith.constant 0 : index
    %c0_12 = arith.constant 0 : index
    %c0_13 = arith.constant 0 : index
    %43 = vector.load %arg4[%c0_11, %c0_12, %c0_13] : memref<1x8x128xf32, #tpu.memory_space<vmem>>, vector<1x8x128xf32>
    %44 = vector.shape_cast %38 : vector<16x1xf32> to vector<1x16x1xf32>
    %cst_14 = arith.constant dense<0.000000e+00> : vector<1xf32>
    %45 = vector.multi_reduction <add>, %44, %cst_14 [1, 2] : vector<1x16x1xf32> to vector<1xf32>
    %46 = vector.shape_cast %45 : vector<1xf32> to vector<1x1x1xf32>
    %47 = vector.extract %46[0, 0, 0] : f32 from vector<1x1x1xf32>
    %48 = vector.broadcast %47 : f32 to vector<1x8x128xf32>
    %49 = arith.addf %43, %48 : vector<1x8x128xf32>
    %c0_15 = arith.constant 0 : index
    %c0_16 = arith.constant 0 : index
    %c0_17 = arith.constant 0 : index
    %50 = vector.load %arg4[%c0_15, %c0_16, %c0_17] : memref<1x8x128xf32, #tpu.memory_space<vmem>>, vector<1x8x128xf32>
    tpu.vector_store %arg4[%c0_15, %c0_16, %c0_17], %49 {strides = array<i32>} : memref<1x8x128xf32, #tpu.memory_space<vmem>>, vector<1x8x128xf32>,
    %c0_18 = arith.constant 0 : index
    %c0_19 = arith.constant 0 : index
    %c0_20 = arith.constant 0 : index
    %51 = vector.load %arg5[%c0_18, %c0_19, %c0_20] : memref<1x8x128xf32, #tpu.memory_space<vmem>>, vector<1x8x128xf32>
    %52 = vector.shape_cast %42 : vector<16x1xf32> to vector<1x16x1xf32>
    %cst_21 = arith.constant dense<0.000000e+00> : vector<1xf32>
    %53 = vector.multi_reduction <add>, %52, %cst_21 [1, 2] : vector<1x16x1xf32> to vector<1xf32>
    %54 = vector.shape_cast %53 : vector<1xf32> to vector<1x1x1xf32>
    %55 = vector.extract %54[0, 0, 0] : f32 from vector<1x1x1xf32>
    %56 = vector.broadcast %55 : f32 to vector<1x8x128xf32>
    %57 = arith.addf %51, %56 : vector<1x8x128xf32>
    %c0_22 = arith.constant 0 : index
    %c0_23 = arith.constant 0 : index
    %c0_24 = arith.constant 0 : index
    %58 = vector.load %arg5[%c0_22, %c0_23, %c0_24] : memref<1x8x128xf32, #tpu.memory_space<vmem>>, vector<1x8x128xf32>
    tpu.vector_store %arg5[%c0_22, %c0_23, %c0_24], %57 {strides = array<i32>} : memref<1x8x128xf32, #tpu.memory_space<vmem>>, vector<1x8x128xf32>,
    return
  }
  func.func @transform_0(%arg0: i32, %arg1: i32) -> (i32, i32) {
    %c1_i32 = arith.constant 1 : i32
    %0 = arith.muli %arg0, %c1_i32 : i32
    %1 = arith.addi %0, %arg1 : i32
    %c0_i32 = arith.constant 0 : i32
    %2 = arith.minsi %1, %c0_i32 : i32
    %c0_i32_0 = arith.constant 0 : i32
    %c0_i32_1 = arith.constant 0 : i32
    return %2, %c0_i32_0 : i32, i32
  }
  func.func @transform_1(%arg0: i32, %arg1: i32) -> (i32, i32) {
    %c1_i32 = arith.constant 1 : i32
    %0 = arith.muli %arg0, %c1_i32 : i32
    %1 = arith.addi %0, %arg1 : i32
    %c0_i32 = arith.constant 0 : i32
    %2 = arith.minsi %1, %c0_i32 : i32
    %c0_i32_0 = arith.constant 0 : i32
    %c0_i32_1 = arith.constant 0 : i32
    return %2, %c0_i32_0 : i32, i32
  }
  func.func @transform_2(%arg0: i32, %arg1: i32) -> (i32, i32, i32) {
    %c0_i32 = arith.constant 0 : i32
    %c0_i32_0 = arith.constant 0 : i32
    %c0_i32_1 = arith.constant 0 : i32
    return %arg0, %c0_i32, %c0_i32_0 : i32, i32, i32
  }
  func.func @transform_3(%arg0: i32, %arg1: i32) -> (i32, i32, i32) {
    %c0_i32 = arith.constant 0 : i32
    %c0_i32_0 = arith.constant 0 : i32
    %c0_i32_1 = arith.constant 0 : i32
    return %arg0, %c0_i32, %c0_i32_0 : i32, i32, i32
  }
}

</mosaic_0001>

<llo_original>
// kernel: tpu_custom_call.1
$region0: #{tpu_custom_call.1}
  #allocation0 [shape = 'u32[]', space=smem, size = 0x4, offset = 0x4, fixed_abs, tag = 'smem constant byte address 0x4 - core index']
  #allocation1 [shape = 'u32[144,128]{1,0:T(1,128)}', space=vmem, size = 0x12000, scoped, tag = 'internal scratch']
  %s0 = inlined_call_operand.vmem [shape: f32[12,32], index: 0, kind: input, shape index: {}]
  %s1 = inlined_call_operand.vmem [shape: s32[12,1], index: 1, kind: input, shape index: {}]
  %s2 = inlined_call_operand.hbm [shape: f32[1,8,128], index: 2, kind: output, shape index: {0}]
  %s3 = inlined_call_operand.hbm [shape: f32[1,8,128], index: 3, kind: output, shape index: {1}]
  %4 = xla_tuple %s2, %s3
  %s5 = sld [smem:[#allocation0]]
  $region30: #{tpu_custom_call.1} parent=0
    _
  %s7 = ssub.s32 1, %s5
  %s8 = scalar_select 0, %s7, %s5
  $region1: #{tpu_custom_call.1} parent=0
    #allocation2 [shape = 'u8[4096]{0}', space=vmem, size = 0x1000, scoped, tag = 'output window, operand 0, single buffered']
    #allocation3 [shape = 's32[1]{0}', space=sflag, size = 0x4, scoped, tag = 'scoped memory for tpu_custom_call.1']
    #allocation4 [shape = 'u8[4096]{0}', space=vmem, size = 0x1000, scoped, tag = 'output window, operand 1, single buffered']
    #allocation5 [shape = 's32[1]{0}', space=sflag, size = 0x4, scoped, tag = 'scoped memory for tpu_custom_call.1']
    %9 = vsyncpa [#allocation3], 0
    %10 = vsyncpa [#allocation5], 0
    // Predicated region
    $region2: #{tpu_custom_call.1} parent=1 // pred_check
      _
    $region3: #{tpu_custom_call.1} parent=1 // pred_check_branch
      %12 = sbr.rel (0) target = $region5
    $region4: #{tpu_custom_call.1} parent=1 // pred_region
      %s13 = sadd.s32 0, 0
      %p14 = scmp.lt.s32.totalorder %s13, 0
      %s15 = scalar_select %p14, %s13, 0
      %s16 = smul.u32 2, %s15
      %p17 = scmp.lt.s32.totalorder %s16, 1
      %s18 = scalar_select %p17, %s16, 1
      %s19 = smul.addr %s18, 8
      %s20 = scalar_lea.vmem %s0, %s19
      %s21 = sadd.s32 0, 0
      %p22 = scmp.lt.s32.totalorder %s21, 0
      %s23 = scalar_select %p22, %s21, 0
      %s24 = smul.u32 2, %s23
    $region5: #{tpu_custom_call.1} parent=1 // pred_fallthru
      _
    // Predicated region
    $region6: #{tpu_custom_call.1} parent=1 // pred_check
      _
    $region7: #{tpu_custom_call.1} parent=1 // pred_check_branch
      %26 = sbr.rel (0) target = $region9
    $region8: #{tpu_custom_call.1} parent=1 // pred_region
      %s27 = sadd.s32 0, 0
      %p28 = scmp.lt.s32.totalorder %s27, 0
      %s29 = scalar_select %p28, %s27, 0
      %s30 = smul.u32 2, %s29
      %p31 = scmp.lt.s32.totalorder %s30, 1
      %s32 = scalar_select %p31, %s30, 1
      %s33 = smul.addr %s32, 8
      %s34 = scalar_lea.vmem %s1, %s33
      %s35 = sadd.s32 0, 0
      %p36 = scmp.lt.s32.totalorder %s35, 0
      %s37 = scalar_select %p36, %s35, 0
      %s38 = smul.u32 2, %s37
    $region9: #{tpu_custom_call.1} parent=1 // pred_fallthru
      _
    %s39 = sadd.s32 0, 0
    %p40 = scmp.lt.s32.totalorder %s39, 0
    %s41 = scalar_select %p40, %s39, 0
    %s42 = smul.u32 2, %s41
    %p43 = scmp.lt.s32.totalorder %s42, 1
    %s44 = scalar_select %p43, %s42, 1
    %s45 = smul.addr %s44, 8
    %s46 = scalar_lea.vmem %s0, %s45
    %s47 = sadd.s32 0, 0
    %p48 = scmp.lt.s32.totalorder %s47, 0
    %s49 = scalar_select %p48, %s47, 0
    %s50 = smul.u32 2, %s49
    %p51 = scmp.lt.s32.totalorder %s50, 1
    %s52 = scalar_select %p51, %s50, 1
    %s53 = smul.addr %s52, 8
    %s54 = scalar_lea.vmem %s1, %s53
    %s55 = sadd.s32 0, 0
    %p56 = scmp.lt.s32.totalorder %s55, 0
    %s57 = scalar_select %p56, %s55, 0
    %s58 = smul.u32 2, %s57
    %p59 = scmp.lt.s32.totalorder %s58, 1
    %s60 = scalar_select %p59, %s58, 1
    %s61 = smul.addr %s60, 8
    %s62 = scalar_lea.vmem %s0, %s61
    %s63 = sadd.s32 0, 0
    %p64 = scmp.lt.s32.totalorder %s63, 0
    %s65 = scalar_select %p64, %s63, 0
    %s66 = smul.u32 2, %s65
    %s67 = sadd.s32 0, 0
    %p68 = scmp.lt.s32.totalorder %s67, 0
    %s69 = scalar_select %p68, %s67, 0
    %s70 = smul.u32 2, %s69
    %p71 = scmp.lt.s32.totalorder %s70, 1
    %s72 = scalar_select %p71, %s70, 1
    %s73 = smul.addr %s72, 8
    %s74 = scalar_lea.vmem %s1, %s73
    %s75 = sadd.s32 0, 0
    %p76 = scmp.lt.s32.totalorder %s75, 0
    %s77 = scalar_select %p76, %s75, 0
    %s78 = smul.u32 2, %s77
    %p79 = scmp.eq.s32.totalorder 0, 0
    // Predicated region
    $region10: #{tpu_custom_call.1} parent=1 // pred_check
      %p80 = pneg %p79
    $region11: #{tpu_custom_call.1} parent=1 // pred_check_branch
      %82 = sbr.rel (%p80) target = $region13
    $region12: #{tpu_custom_call.1} parent=1 // pred_region
      %83 = vst [vmem:[#allocation2] sm:$0xff] 0.0
      %84 = vst [vmem:[#allocation4] sm:$0xff] 0.0
    $region13: #{tpu_custom_call.1} parent=1 // pred_fallthru
      _
    %v85 = vld [vmem:[%s62] sm:$0xff]
    %v86 = vld [vmem:[%s62 + $0x8] sm:$0xff]
    %v87 = vld [vmem:[%s74] sm:$0xff]
    %v88 = vld [vmem:[%s74 + $0x8] sm:$0xff]
    %vm89 = vcmask 261120
    %v90 = vsel %vm89, %v85, -inf
    %91 = vmax.xlane.f32.xlu0 %v90
    %v92 = vpop.xlane.xlu0 %91
    %v93 = vsel %vm89, %v86, -inf
    %94 = vmax.xlane.f32.xlu0 %v93
    %v95 = vpop.xlane.xlu0 %94
    %v96 = vsub.f32 %v85, %v92
    %v97 = vsub.f32 %v86, %v95
    %v98 = vmul.f32 %v96, 1.442695
    %v99 = vpow.pop %v98
    %v100 = vmul.f32 %v97, 1.442695
    %v101 = vpow.pop %v100
    %v102 = vsel %vm89, %v99, 0.0
    %103 = vadd.xlane.f32.xlu0 %v102
    %v104 = vpop.xlane.xlu0 %103
    %v105 = vsel %vm89, %v101, 0.0
    %106 = vadd.xlane.f32.xlu0 %v105
    %v107 = vpop.xlane.xlu0 %106
    %v108 = vlog2.pop %v104
    %v109 = vmul.f32 %v108, 0.6931472
    %v110 = vlog2.pop %v107
    %v111 = vmul.f32 %v110, 0.6931472
    %v112 = vadd.f32 %v92, %v109
    %v113 = vadd.f32 %v95, %v111
    %v114 = vsel %vm89, %v85, 0.0
    %115 = vadd.xlane.f32.xlu0 %v114
    %v116 = vpop.xlane.xlu0 %115
    %v117 = vsel %vm89, %v86, 0.0
    %118 = vadd.xlane.f32.xlu0 %v117
    %v119 = vpop.xlane.xlu0 %118
    %v120 = vmul.f32 %v112, 32.0
    %v121 = vmul.f32 %v113, 32.0
    %v122 = vsub.f32 %v120, %v116
    %v123 = vsub.f32 %v121, %v119
    %v124 = vlaneseq
    %v125 = vand.u32 %v124, 127
    %126 = vset.pattern.permute.xlu0 0
    %127 = vperm.xlu0 %126, %v87
    %v128 = vpop.permute.xlu0 %127
    %129 = vset.pattern.permute.xlu0 0
    %130 = vperm.xlu0 %129, %v88
    %v131 = vpop.permute.xlu0 %130
    %vm132 = vcmp.eq.s32.totalorder %v125, %v128
    %vm133 = vcmp.eq.s32.totalorder %v125, %v131
    %v134 = vsel %vm132, %v85, 0.0
    %v135 = vsel %vm133, %v86, 0.0
    %v136 = vsel %vm89, %v134, 0.0
    %137 = vadd.xlane.f32.xlu0 %v136
    %v138 = vpop.xlane.xlu0 %137
    %v139 = vsel %vm89, %v135, 0.0
    %140 = vadd.xlane.f32.xlu0 %v139
    %v141 = vpop.xlane.xlu0 %140
    %vm142 = vcmp.ne.s32.totalorder %v87, 4294967196
    %vm143 = vcmp.ne.s32.totalorder %v88, 4294967196
    %s144 = sadd.s32 0, 0
    %s145 = smul.u32 %s144, 16
    %v146 = vlaneseq
    %v147 = vshrl.u32 %v146, 7
    %v148 = vadd.s32 %v147, 8
    %v149 = vstv %s145
    %v150 = vadd.s32 %v149, %v147
    %v151 = vadd.s32 %v149, %v148
    %vm152 = vcmp.lt.s32.totalorder %v150, 12
    %vm153 = vcmp.lt.s32.totalorder %v151, 12
    %v154 = vsel %vm152, %v122, 0.0
    %v155 = vsel %vm153, %v123, 0.0
    %vm156 = vmand %vm142, %vm152
    %vm157 = vmand %vm143, %vm153
    %v158 = vsub.f32 %v112, %v138
    %v159 = vsub.f32 %v113, %v141
    %v160 = vsel %vm156, %v158, 0.0
    %v161 = vsel %vm157, %v159, 0.0
    %v162 = vld [vmem:[#allocation2] sm:$0xff]
    %vm163 = vcmask 7168
    %v164 = vsel %vm163, %v154, 0.0
    %v165 = vsel %vm163, %v155, 0.0
    %v166 = vadd.f32 %v164, %v165
    %167 = vadd.xlane.f32.xlu0 %v166
    %v168 = vpop.xlane.xlu0 %167
    %v169 = vrot.slane %v168, 4
    %v170 = vadd.f32 %v168, %v169
    %v171 = vrot.slane %v170, 2
    %v172 = vadd.f32 %v170, %v171
    %v173 = vrot.slane %v172, 1
    %v174 = vadd.f32 %v172, %v173
    %s175 = vtos %v174
    %v176 = vstv %s175
    %v177 = vadd.f32 %v162, %v176
    %178 = vst [vmem:[#allocation2] sm:$0xff] %v177
    %v179 = vld [vmem:[#allocation4] sm:$0xff]
    %v180 = vsel %vm163, %v160, 0.0
    %v181 = vsel %vm163, %v161, 0.0
    %v182 = vadd.f32 %v180, %v181
    %183 = vadd.xlane.f32.xlu0 %v182
    %v184 = vpop.xlane.xlu0 %183
    %v185 = vrot.slane %v184, 4
    %v186 = vadd.f32 %v184, %v185
    %v187 = vrot.slane %v186, 2
    %v188 = vadd.f32 %v186, %v187
    %v189 = vrot.slane %v188, 1
    %v190 = vadd.f32 %v188, %v189
    %s191 = vtos %v190
    %v192 = vstv %s191
    %v193 = vadd.f32 %v179, %v192
    %194 = vst [vmem:[#allocation4] sm:$0xff] %v193
    // Predicated region
    $region14: #{tpu_custom_call.1} parent=1 // pred_check
      _
    $region15: #{tpu_custom_call.1} parent=1 // pred_check_branch
      %196 = sbr.rel (0) target = $region17
    $region16: #{tpu_custom_call.1} parent=1 // pred_region
      %s198 = ssub.s32 128, 128
      %199 = vsyncadd [#allocation3], %s198
      %s201 = sshll.u32 [#allocation2], 4
      %s202 = int_to_ptr.vmem [resolvable:$true] %s201
      %204 = dma.vmem_to_hbm [thread:$0]  %s202, 128, %s2, [#allocation3]
    $region17: #{tpu_custom_call.1} parent=1 // pred_fallthru
      _
    // Predicated region
    $region18: #{tpu_custom_call.1} parent=1 // pred_check
      _
    $region19: #{tpu_custom_call.1} parent=1 // pred_check_branch
      %206 = sbr.rel (0) target = $region21
    $region20: #{tpu_custom_call.1} parent=1 // pred_region
      %s208 = ssub.s32 128, 128
      %209 = vsyncadd [#allocation5], %s208
      %s211 = sshll.u32 [#allocation4], 4
      %s212 = int_to_ptr.vmem [resolvable:$true] %s211
      %214 = dma.vmem_to_hbm [thread:$0]  %s212, 128, %s3, [#allocation5]
    $region21: #{tpu_custom_call.1} parent=1 // pred_fallthru
      _
    // Predicated region
    $region22: #{tpu_custom_call.1} parent=1 // pred_check
      _
    $region23: #{tpu_custom_call.1} parent=1 // pred_check_branch
      %216 = sbr.rel (0) target = $region25
    $region24: #{tpu_custom_call.1} parent=1 // pred_region
      %217 = dma.done [#allocation3], 128
    $region25: #{tpu_custom_call.1} parent=1 // pred_fallthru
      _
    // Predicated region
    $region26: #{tpu_custom_call.1} parent=1 // pred_check
      _
    $region27: #{tpu_custom_call.1} parent=1 // pred_check_branch
      %219 = sbr.rel (0) target = $region29
    $region28: #{tpu_custom_call.1} parent=1 // pred_region
      %220 = dma.done [#allocation5], 128
    $region29: #{tpu_custom_call.1} parent=1 // pred_fallthru
      _
    %221 = vsyncpa [#allocation3], 1
    %222 = vsyncpa [#allocation5], 1

</llo_original>
